<compile_context>
chip_gen: v6e
topology: v6e:2x2x1
jax: 0.10.0
libtpu: 0.0.40
codegen_flags: <defaults>
</compile_context>

<pallas_src>
import jax
import jax.numpy as jnp
from jax import lax
from jax.experimental import pallas as pl
from jax.experimental.pallas import tpu as pltpu

_INV_SQRT2 = 0.7071067811865476
_LANE_CANDIDATES = (2048, 1024, 512, 256, 128)


def _gelu_kernel(x_ref, o_ref):
    x = x_ref[...].astype(jnp.float32)  # no-op for f32 inputs
    # Exact GELU: 0.5 * x * (1 + erf(x / sqrt(2)))
    y = 0.5 * x * (1.0 + lax.erf(x * _INV_SQRT2))
    o_ref[...] = y.astype(o_ref.dtype)


def _per_buffer_target_bytes() -> int:
    """Per-buffer (block) byte target, gated on chip generation.

    4 buffers are live at once (in + out, each double-buffered):
      v5e (16 MiB default scoped VMEM):      2 MiB blocks ->  8 MiB total
      v6e / v7x (32 MiB default scoped):     4 MiB blocks -> 16 MiB total
    Larger blocks amortize the ~0.35 us per-grid-step overhead against v7x's
    ~3.2 TB/s/TC HBM bandwidth.
    """
    try:
        kind = jax.devices()[0].device_kind.lower()
    except Exception:  # pragma: no cover - defensive
        kind = ""
    if ("v6" in kind) or ("v7" in kind) or ("7x" in kind):
        return 4 * 1024 * 1024
    return 2 * 1024 * 1024


def _small_gelu(flat: jax.Array) -> jax.Array:
    """Whole (tiny, < 128-element) array as a single full-extent block."""
    m = flat.size
    out = pl.pallas_call(
        _gelu_kernel,
        out_shape=jax.ShapeDtypeStruct((1, m), flat.dtype),
    )(flat.reshape(1, m))
    return out.reshape(-1)


def _tiled_gelu(flat: jax.Array) -> jax.Array:
    """Tiled path; flat.size must be a multiple of 128."""
    n = flat.size
    dtype = flat.dtype
    itemsize = dtype.itemsize

    # Widest lane-dense last dim that divides n (wide unmasked vst).
    lane = 128
    for cand in _LANE_CANDIDATES:
        if n % cand == 0:
            lane = cand
            break

    rows = n // lane
    x2d = flat.reshape(rows, lane)

    # Sublane alignment: sub-32-bit dtypes pack along sublanes
    # (f32 -> 8, bf16 -> 16, int8/fp8 -> 32).
    align = max(8, 32 // max(1, itemsize))

    # Byte-based block sizing (dtype-aware), sublane-aligned.
    target_rows = max(align, _per_buffer_target_bytes() // (lane * itemsize))
    tile_rows = max(align, (target_rows // align) * align)

    if tile_rows >= rows:
        tile_rows = rows  # full-extent second-to-last dim is always legal
        # Give v7x's 2 TensorCores at least 2 grid steps when the input is big
        # enough that the extra ~0.35 us step overhead is negligible.
        if rows >= 2 * align and n * itemsize >= (1 << 20):
            half = ((rows + 1) // 2 + align - 1) // align * align
            tile_rows = min(half, rows)

    grid = (pl.cdiv(rows, tile_rows),)  # partial trailing block handled by Pallas

    cost = pl.CostEstimate(
        flops=10 * n,                    # erf lowers to a short VPU polynomial
        transcendentals=n,               # advisory only
        bytes_accessed=2 * n * itemsize,  # read once, write once
    )

    out2d = pl.pallas_call(
        _gelu_kernel,
        out_shape=jax.ShapeDtypeStruct((rows, lane), dtype),
        grid_spec=pltpu.PrefetchScalarGridSpec(
            num_scalar_prefetch=0,
            grid=grid,
            in_specs=[pl.BlockSpec((tile_rows, lane), lambda i: (i, 0))],
            out_specs=pl.BlockSpec((tile_rows, lane), lambda i: (i, 0)),
        ),
        compiler_params=pltpu.CompilerParams(
            # Independent elementwise row tiles: shards across v7x's 2 TCs.
            dimension_semantics=("parallel",),
        ),
        cost_estimate=cost,
    )(x2d)
    return out2d.reshape(-1)


def gelu_pallas(x: jax.Array) -> jax.Array:
    """Exact GELU applied elementwise, matching F.gelu(input)."""
    orig_shape = x.shape
    n = x.size
    if n == 0:
        return x
    flat = x.reshape(-1)
    rem = n % 128

    if rem == 0:
        out = _tiled_gelu(flat)
    elif n < 128:
        out = _small_gelu(flat)
    else:
        # Lane-divisible prefix through the tiled kernel; the (<128-element)
        # tail with plain jnp.  Avoids the old pad + slice round trips.
        head = _tiled_gelu(flat[: n - rem])
        tail_x = flat[n - rem :].astype(jnp.float32)
        tail = (0.5 * tail_x * (1.0 + lax.erf(tail_x * _INV_SQRT2))).astype(flat.dtype)
        out = jnp.concatenate([head, tail])

    return out.reshape(orig_shape)


if __name__ == "__main__":
    # NCHW input consistent with the conv-style module usage.
    x = jax.random.normal(jax.random.PRNGKey(0), (2, 4, 16, 16), dtype=jnp.float32)
    y = gelu_pallas(x)
    jax.block_until_ready(y)
    y_ref = jax.nn.gelu(x, approximate=False)
    assert jnp.allclose(y, y_ref, atol=1e-5, rtol=1e-5), "mismatch (lane-divisible path)"

    # Ragged (prefix + jnp tail) path: 2*3*5*7 = 210 elements, not /128.
    x2 = jax.random.normal(jax.random.PRNGKey(1), (2, 3, 5, 7), dtype=jnp.float32)
    y2 = gelu_pallas(x2)
    jax.block_until_ready(y2)
    y2_ref = jax.nn.gelu(x2, approximate=False)
    assert jnp.allclose(y2, y2_ref, atol=1e-5, rtol=1e-5), "mismatch (ragged path)"

    # Tiny (<128 elements) whole-array path: 3*5*7 = 105 elements.
    x3 = jax.random.normal(jax.random.PRNGKey(2), (3, 5, 7), dtype=jnp.float32)
    y3 = gelu_pallas(x3)
    jax.block_until_ready(y3)
    y3_ref = jax.nn.gelu(x3, approximate=False)
    assert jnp.allclose(y3, y3_ref, atol=1e-5, rtol=1e-5), "mismatch (tiny path)"

    # bf16 input (f32 internal compute, rounded back to bf16).
    x4 = jax.random.normal(jax.random.PRNGKey(3), (2, 4, 16, 16), dtype=jnp.bfloat16)
    y4 = gelu_pallas(x4)
    jax.block_until_ready(y4)
    y4_ref = jax.nn.gelu(x4.astype(jnp.float32), approximate=False).astype(jnp.bfloat16)
    assert jnp.allclose(
        y4.astype(jnp.float32), y4_ref.astype(jnp.float32), atol=2e-2, rtol=2e-2
    ), "mismatch (bf16 path)"

    print("KERNEL_OK")
</pallas_src>

<mosaic_0001>
module attributes {stable_mosaic.version = 11 : i64} {
  func.func @_gelu_kernel(%arg0: i32, %arg1: memref<1x2048xf32, #tpu.memory_space<vmem>>, %arg2: memref<1x2048xf32, #tpu.memory_space<vmem>>) attributes {dimension_semantics = [#tpu.dimension_semantics<parallel>], iteration_bounds = array<i64: 1>, scalar_prefetch = 0 : i64, scratch_operands = 0 : i64, tpu.core_type = #tpu.core_type<tc>, window_params = [{transform_indices = @transform_0, window_bounds = array<i64: 1, 2048>}, {transform_indices = @transform_1, window_bounds = array<i64: 1, 2048>}]} {
    %c0 = arith.constant 0 : index
    %c0_0 = arith.constant 0 : index
    %0 = vector.load %arg1[%c0, %c0_0] : memref<1x2048xf32, #tpu.memory_space<vmem>>, vector<1x2048xf32>
    %cst = arith.constant 5.000000e-01 : f32
    %1 = vector.broadcast %cst : f32 to vector<1x2048xf32>
    %2 = arith.mulf %1, %0 : vector<1x2048xf32>
    %cst_1 = arith.constant 0.707106769 : f32
    %3 = vector.broadcast %cst_1 : f32 to vector<1x2048xf32>
    %4 = arith.mulf %0, %3 : vector<1x2048xf32>
    %5 = math.erf %4 : vector<1x2048xf32>
    %cst_2 = arith.constant 1.000000e+00 : f32
    %6 = vector.broadcast %cst_2 : f32 to vector<1x2048xf32>
    %7 = arith.addf %6, %5 : vector<1x2048xf32>
    %8 = arith.mulf %2, %7 : vector<1x2048xf32>
    %c0_3 = arith.constant 0 : index
    %c0_4 = arith.constant 0 : index
    %9 = vector.load %arg2[%c0_3, %c0_4] : memref<1x2048xf32, #tpu.memory_space<vmem>>, vector<1x2048xf32>
    tpu.vector_store %arg2[%c0_3, %c0_4], %8 {strides = array<i32>} : memref<1x2048xf32, #tpu.memory_space<vmem>>, vector<1x2048xf32>,
    return
  }
  func.func @transform_0(%arg0: i32) -> (i32, i32) {
    %c0_i32 = arith.constant 0 : i32
    %c0_i32_0 = arith.constant 0 : i32
    return %arg0, %c0_i32 : i32, i32
  }
  func.func @transform_1(%arg0: i32) -> (i32, i32) {
    %c0_i32 = arith.constant 0 : i32
    %c0_i32_0 = arith.constant 0 : i32
    return %arg0, %c0_i32 : i32, i32
  }
}

</mosaic_0001>

<llo_original>
// kernel: tpu_custom_call.1
$region0: #{tpu_custom_call.1}
  #allocation0 [shape = 'u32[]', space=smem, size = 0x4, offset = 0x4, fixed_abs, tag = 'smem constant byte address 0x4 - core index']
  #allocation1 [shape = 'u32[144,128]{1,0:T(1,128)}', space=vmem, size = 0x12000, scoped, tag = 'internal scratch']
  %s0 = inlined_call_operand.hbm [shape: f32[1,2048], index: 0, kind: input, shape index: {}]
  %s1 = inlined_call_operand.hbm [shape: f32[1,2048], index: 1, kind: output, shape index: {}]
  %s2 = sld [smem:[#allocation0]]
  $region18: #{tpu_custom_call.1} parent=0
    _
  %s4 = ssub.s32 1, %s2
  %s5 = scalar_select 0, %s4, %s2
  $region1: #{tpu_custom_call.1} parent=0
    #allocation2 [shape = 'u8[8192]{0}', space=vmem, size = 0x2000, scoped, tag = 'input window, operand 0, single buffered']
    #allocation3 [shape = 's32[1]{0}', space=sflag, size = 0x4, scoped, tag = 'scoped memory for tpu_custom_call.1']
    #allocation4 [shape = 's32[1]{0}', space=sflag, size = 0x4, scoped, tag = 'scoped memory for tpu_custom_call.1']
    #allocation5 [shape = 'u8[8192]{0}', space=vmem, size = 0x2000, scoped, tag = 'output window, operand 0, single buffered']
    %6 = vsyncpa [#allocation3], 0
    %7 = vsyncpa [#allocation4], 0
    // Predicated region
    $region2: #{tpu_custom_call.1} parent=1 // pred_check
      _
    $region3: #{tpu_custom_call.1} parent=1 // pred_check_branch
      %9 = sbr.rel (0) target = $region5
    $region4: #{tpu_custom_call.1} parent=1 // pred_region
      %s11 = ssub.s32 256, 256
      %12 = vsyncadd [#allocation3], %s11
      %s14 = sshll.u32 [#allocation2], 4
      %s15 = int_to_ptr.vmem [resolvable:$true] %s14
      %17 = dma.hbm_to_vmem [thread:$0]  %s0, 256, %s15, [#allocation3]
    $region5: #{tpu_custom_call.1} parent=1 // pred_fallthru
      _
    // Predicated region
    $region6: #{tpu_custom_call.1} parent=1 // pred_check
      _
    $region7: #{tpu_custom_call.1} parent=1 // pred_check_branch
      %19 = sbr.rel (0) target = $region9
    $region8: #{tpu_custom_call.1} parent=1 // pred_region
      %20 = dma.done [#allocation3], 256
    $region9: #{tpu_custom_call.1} parent=1 // pred_fallthru
      _
    %v21 = vld [vmem:[#allocation2] sm:$0xff]
    %v22 = vld [vmem:[#allocation2 + $0x8] sm:$0xff]
    %v23 = vmul.f32 %v21, 0.5
    %v24 = vmul.f32 %v22, 0.5
    %v25 = vmul.f32 %v21, 0.70710677
    %v26 = vmul.f32 %v22, 0.70710677
    %v27 = verf.f32.pop %v25
    %v28 = verf.f32.pop %v26
    %v29 = vadd.f32 %v27, 1.0
    %v30 = vadd.f32 %v28, 1.0
    %v31 = vmul.f32 %v23, %v29
    %v32 = vmul.f32 %v24, %v30
    %33 = vst [vmem:[#allocation5] sm:$0xff] %v31
    %34 = vst [vmem:[#allocation5 + $0x8] sm:$0xff] %v32
    // Predicated region
    $region10: #{tpu_custom_call.1} parent=1 // pred_check
      _
    $region11: #{tpu_custom_call.1} parent=1 // pred_check_branch
      %36 = sbr.rel (0) target = $region13
    $region12: #{tpu_custom_call.1} parent=1 // pred_region
      %s38 = ssub.s32 256, 256
      %39 = vsyncadd [#allocation4], %s38
      %s41 = sshll.u32 [#allocation5], 4
      %s42 = int_to_ptr.vmem [resolvable:$true] %s41
      %44 = dma.vmem_to_hbm [thread:$0]  %s42, 256, %s1, [#allocation4]
    $region13: #{tpu_custom_call.1} parent=1 // pred_fallthru
      _
    // Predicated region
    $region14: #{tpu_custom_call.1} parent=1 // pred_check
      _
    $region15: #{tpu_custom_call.1} parent=1 // pred_check_branch
      %46 = sbr.rel (0) target = $region17
    $region16: #{tpu_custom_call.1} parent=1 // pred_region
      %47 = dma.done [#allocation4], 256
    $region17: #{tpu_custom_call.1} parent=1 // pred_fallthru
      _
    %48 = vsyncpa [#allocation3], 1
    %49 = vsyncpa [#allocation4], 1

</llo_original>
